<compile_context>
chip_gen: v6e
topology: v6e:2x2x1
jax: 0.10.0
libtpu: 0.0.40
codegen_flags: <defaults>
</compile_context>

<pallas_src>
import functools
import math

import jax
import jax.numpy as jnp
from jax.experimental import pallas as pl
from jax.experimental.pallas import tpu as pltpu


def _qkv_proj_kernel(x_ref, w_ref, b_ref, qkv_ref):
    """One (t_tile, C) @ (C, hd) per-head projection per grid step.

    Ref shapes:
      x_ref   : (1, t_tile, C)
      w_ref   : (1, C, hd)       one of the 3*H per-head weight slices
      b_ref   : (1, 1, hd)
      qkv_ref : (1, 1, t_tile, hd)
    """
    x = x_ref[0].astype(w_ref.dtype)          # cast to the MXU dtype in-kernel
    out = jnp.dot(x, w_ref[0], preferred_element_type=jnp.float32)
    out = out + b_ref[0].astype(jnp.float32)
    qkv_ref[0, 0] = out.astype(qkv_ref.dtype)


def _flash_attn_kernel(q_ref, k_ref, v_ref, w_proj_ref, b_proj_ref, o_ref,
                       q_scr, m_scr, l_scr, acc_scr, o_acc,
                       *, n_head, scale, block_q):
    """Grid: (batch, q_tile, head, kv_tile); kv_tile innermost.

    Ref shapes:
      q_ref/k_ref/v_ref : (1, 1, block, hd)
      w_proj_ref        : (1, hd, C)   per-head slice of the output projection
      b_proj_ref        : (1, C)
      o_ref             : (1, block, C)
    """
    qi = pl.program_id(1)
    h = pl.program_id(2)
    ki = pl.program_id(3)

    # One fused output accumulator per (batch, q tile); zero it at the start
    # of the (head, kv) loop nest.
    @pl.when(jnp.logical_and(h == 0, ki == 0))
    def _():
        o_acc[...] = jnp.zeros_like(o_acc)

    # Per-(q tile, head) init: fold 1/sqrt(hd) into q once and reset the
    # online-softmax state.
    @pl.when(ki == 0)
    def _():
        q_scr[...] = (q_ref[0, 0].astype(jnp.float32) * scale).astype(q_scr.dtype)
        m_scr[...] = jnp.full_like(m_scr, -jnp.inf)
        l_scr[...] = jnp.zeros_like(l_scr)
        acc_scr[...] = jnp.zeros_like(acc_scr)

    # Causal block skipping: kv tiles strictly above the diagonal do no work.
    @pl.when(ki <= qi)
    def _():
        k = k_ref[0, 0]                                   # (block, hd)
        v = v_ref[0, 0]
        # Q . K^T without an explicit transpose (contract the hd axis).
        s = jax.lax.dot_general(
            q_scr[...], k, (((1,), (1,)), ((), ())),
            preferred_element_type=jnp.float32)           # (block, block) f32
        # Tile-local causal mask (all-true for ki < qi). Finite fill value
        # avoids the -inf - -inf = NaN corner case.
        row = jax.lax.broadcasted_iota(jnp.int32, s.shape, 0)
        col = jax.lax.broadcasted_iota(jnp.int32, s.shape, 1)
        s = jnp.where(row + (qi - ki) * block_q >= col, s, -1e30)

        m_prev = m_scr[...]                               # (block, 1)
        m_new = jnp.maximum(m_prev, jnp.max(s, axis=-1, keepdims=True))
        alpha = jnp.exp(m_prev - m_new)
        p = jnp.exp(s - m_new)                            # unnormalised probs
        l_scr[...] = alpha * l_scr[...] + jnp.sum(p, axis=-1, keepdims=True)
        acc_scr[...] = alpha * acc_scr[...] + jnp.dot(
            p.astype(v.dtype), v, preferred_element_type=jnp.float32)
        m_scr[...] = m_new

    # The diagonal tile is the last one processed for this (q tile, head):
    # apply the deferred softmax denominator on the (block, hd) result and
    # fold this head straight into the output projection (no concat).
    @pl.when(ki == qi)
    def _():
        y_h = acc_scr[...] / l_scr[...]                   # (block, hd) f32
        o_acc[...] += jnp.dot(y_h.astype(w_proj_ref.dtype), w_proj_ref[0],
                              preferred_element_type=jnp.float32)

    # Last head's diagonal tile: add the projection bias and emit the tile.
    @pl.when(jnp.logical_and(h == n_head - 1, ki == qi))
    def _():
        o_ref[0] = (o_acc[...] + b_proj_ref[...].astype(jnp.float32)
                    ).astype(o_ref.dtype)


def causal_self_attention(x, w_attn, b_attn, w_proj, b_proj, *, n_head,
                          block=256, compute_dtype=jnp.bfloat16):
    """CausalSelfAttention forward.

    x      : (B, T, C)
    w_attn : (C, 3C)  pre-transposed nn.Linear weight;  b_attn : (3C,)
    w_proj : (C, C)   pre-transposed;                    b_proj : (C,)
    block  : sequence tile for q/kv (use 128 on v5e, 256 on v6e/v7x).
    compute_dtype : MXU input dtype (bf16 recommended); accumulation and
                    softmax statistics stay in float32.
    """
    B, T, C = x.shape
    H = n_head
    assert C % H == 0, "n_embd must be divisible by n_head"
    hd = C // H
    block = min(block, T)
    assert T % block == 0, "T must be divisible by the sequence tile"
    n_t = T // block
    cd = jnp.dtype(compute_dtype)
    itm = cd.itemsize

    # --- layout plumbing (one-time, wrapper side; no activation math) ------
    # per-head QKV weight slices: (3*H, C, hd) with j = part*H + h
    w_qkv_h = (w_attn.reshape(C, 3, H, hd)
               .transpose(1, 2, 0, 3)
               .reshape(3 * H, C, hd).astype(cd))
    b_qkv_h = b_attn.reshape(3 * H, 1, hd).astype(cd)
    # per-head output-projection slices: (H, hd, C)
    w_proj_h = w_proj.reshape(H, hd, C).astype(cd)
    b_proj_2 = b_proj.reshape(1, C).astype(cd)

    qkv_cost = pl.CostEstimate(
        flops=int(2 * B * T * C * 3 * C),
        transcendentals=0,
        bytes_accessed=int(jnp.dtype(x.dtype).itemsize * B * T * C
                           + itm * (3 * C * C + 3 * C + B * 3 * C * T)))

    # --- kernel 1: per-head QKV projection ---------------------------------
    qkv_h = pl.pallas_call(
        _qkv_proj_kernel,
        out_shape=jax.ShapeDtypeStruct((B, 3 * H, T, hd), cd),
        grid_spec=pltpu.PrefetchScalarGridSpec(
            num_scalar_prefetch=0,
            grid=(B, n_t, 3 * H),          # head axis innermost: x tile reused
            in_specs=[
                pl.BlockSpec((1, block, C), lambda b, t, j: (b, t, 0)),
                pl.BlockSpec((1, C, hd), lambda b, t, j: (j, 0, 0)),
                pl.BlockSpec((1, 1, hd), lambda b, t, j: (j, 0, 0)),
            ],
            out_specs=pl.BlockSpec((1, 1, block, hd),
                                   lambda b, t, j: (b, j, t, 0)),
        ),
        compiler_params=pltpu.CompilerParams(
            dimension_semantics=("parallel", "parallel", "parallel"),
            vmem_limit_bytes=48 * 1024 * 1024),
        cost_estimate=qkv_cost,
    )(x, w_qkv_h, b_qkv_h)

    # --- kernel 2: flash attention + fused output projection ---------------
    causal_blocks = n_t * (n_t + 1) // 2
    attn_cost = pl.CostEstimate(
        flops=int(B * H * causal_blocks * 4 * block * block * hd
                  + B * H * n_t * 2 * block * hd * C),
        transcendentals=int(B * H * causal_blocks * block * block),
        bytes_accessed=int(itm * (B * H * T * hd
                                  + 2 * B * H * causal_blocks * block * hd
                                  + H * hd * C + C)
                           + jnp.dtype(x.dtype).itemsize * B * T * C))

    scale = 1.0 / math.sqrt(hd)
    kernel = functools.partial(_flash_attn_kernel, n_head=H, scale=scale,
                               block_q=block)
    out = pl.pallas_call(
        kernel,
        out_shape=jax.ShapeDtypeStruct((B, T, C), x.dtype),
        grid_spec=pltpu.PrefetchScalarGridSpec(
            num_scalar_prefetch=0,
            grid=(B, n_t, H, n_t),         # (batch, q tile, head, kv tile)
            in_specs=[
                # q tile for head h (constant across kv -> fetched once)
                pl.BlockSpec((1, 1, block, hd),
                             lambda b, qi, h, ki: (b, h, qi, 0)),
                # k tile; clamp avoids fetching skipped upper-triangular tiles
                pl.BlockSpec((1, 1, block, hd),
                             lambda b, qi, h, ki:
                             (b, H + h, jnp.minimum(ki, qi), 0)),
                # v tile
                pl.BlockSpec((1, 1, block, hd),
                             lambda b, qi, h, ki:
                             (b, 2 * H + h, jnp.minimum(ki, qi), 0)),
                # per-head slice of the output projection
                pl.BlockSpec((1, hd, C), lambda b, qi, h, ki: (h, 0, 0)),
                pl.BlockSpec((1, C), lambda b, qi, h, ki: (0, 0)),
            ],
            out_specs=pl.BlockSpec((1, block, C),
                                   lambda b, qi, h, ki: (b, qi, 0)),
            scratch_shapes=[
                pltpu.VMEM((block, hd), cd),            # scaled q tile
                pltpu.VMEM((block, 1), jnp.float32),    # m (running max)
                pltpu.VMEM((block, 1), jnp.float32),    # l (running denom)
                pltpu.VMEM((block, hd), jnp.float32),   # per-head acc
                pltpu.VMEM((block, C), jnp.float32),    # fused out-proj acc
            ],
        ),
        compiler_params=pltpu.CompilerParams(
            dimension_semantics=("parallel", "parallel",
                                 "arbitrary", "arbitrary"),
            vmem_limit_bytes=48 * 1024 * 1024),
        cost_estimate=attn_cost,
    )(qkv_h, qkv_h, qkv_h, w_proj_h, b_proj_2)
    return out


def reference_attention(x, w_attn, b_attn, w_proj, b_proj, *, n_head):
    """Pure-JAX reference mirroring the PyTorch forward."""
    B, T, C = x.shape
    hd = C // n_head
    qkv = x @ w_attn + b_attn                              # (B, T, 3C)
    q, k, v = jnp.split(qkv, 3, axis=-1)
    q = q.reshape(B, T, n_head, hd).transpose(0, 2, 1, 3)  # (B, H, T, hd)
    k = k.reshape(B, T, n_head, hd).transpose(0, 2, 1, 3)
    v = v.reshape(B, T, n_head, hd).transpose(0, 2, 1, 3)
    att = (q @ jnp.swapaxes(k, -2, -1)) * (1.0 / math.sqrt(hd))
    mask = jnp.tril(jnp.ones((T, T), bool))
    att = jnp.where(mask[None, None], att, -jnp.inf)
    att = jax.nn.softmax(att, axis=-1)
    y = att @ v                                            # (B, H, T, hd)
    y = y.transpose(0, 2, 1, 3).reshape(B, T, C)
    return y @ w_proj + b_proj


if __name__ == "__main__":
    # Small config: block_size >= T, n_embd divisible by n_head, C a multiple
    # of 128 so every lane-dim block is either full or 128-aligned.
    B, T, C, N_HEAD = 2, 16, 128, 4

    key = jax.random.PRNGKey(0)
    kx, k1, k2, k3, k4 = jax.random.split(key, 5)

    x = jax.random.normal(kx, (B, T, C), dtype=jnp.float32)

    # nn.Linear-style deterministic init, stored as (in, out) so kernels do
    # x @ W + b.
    bound = 1.0 / math.sqrt(C)
    w_attn = jax.random.uniform(k1, (C, 3 * C), jnp.float32, -bound, bound)
    b_attn = jax.random.uniform(k2, (3 * C,), jnp.float32, -bound, bound)
    w_proj = jax.random.uniform(k3, (C, C), jnp.float32, -bound, bound)
    b_proj = jax.random.uniform(k4, (C,), jnp.float32, -bound, bound)

    ref = reference_attention(x, w_attn, b_attn, w_proj, b_proj,
                              n_head=N_HEAD)

    # f32 compute path — tighter check of the flash/online-softmax structure.
    out_f32 = causal_self_attention(x, w_attn, b_attn, w_proj, b_proj,
                                    n_head=N_HEAD,
                                    compute_dtype=jnp.float32)
    out_f32 = jax.block_until_ready(out_f32)
    assert out_f32.shape == (B, T, C)
    assert jnp.allclose(out_f32, ref, atol=1e-2, rtol=1e-2), \
        "f32 kernel mismatch vs reference"

    # bf16 MXU path (production default) — looser tolerance.
    out_bf16 = causal_self_attention(x, w_attn, b_attn, w_proj, b_proj,
                                     n_head=N_HEAD)
    out_bf16 = jax.block_until_ready(out_bf16)
    assert out_bf16.shape == (B, T, C)
    assert jnp.allclose(out_bf16, ref, atol=5e-2, rtol=5e-2), \
        "bf16 kernel mismatch vs reference"

    print("KERNEL_OK")
</pallas_src>

<mosaic_0001>
module attributes {stable_mosaic.version = 11 : i64} {
  func.func @_qkv_proj_kernel(%arg0: i32, %arg1: i32, %arg2: i32, %arg3: memref<1x16x128xf32, #tpu.memory_space<vmem>>, %arg4: memref<1x128x32xf32, #tpu.memory_space<vmem>>, %arg5: memref<1x1x32xf32, #tpu.memory_space<vmem>>, %arg6: memref<1x1x16x32xf32, #tpu.memory_space<vmem>>) attributes {dimension_semantics = [#tpu.dimension_semantics<parallel>, #tpu.dimension_semantics<parallel>, #tpu.dimension_semantics<parallel>], iteration_bounds = array<i64: 2, 1, 12>, scalar_prefetch = 0 : i64, scratch_operands = 0 : i64, tpu.core_type = #tpu.core_type<tc>, window_params = [{transform_indices = @transform_0, window_bounds = array<i64: 1, 16, 128>}, {transform_indices = @transform_1, window_bounds = array<i64: 1, 128, 32>}, {transform_indices = @transform_2, window_bounds = array<i64: 1, 1, 32>}, {transform_indices = @transform_3, window_bounds = array<i64: 1, 1, 16, 32>}]} {
    %c0 = arith.constant 0 : index
    %c0_0 = arith.constant 0 : index
    %c0_1 = arith.constant 0 : index
    %0 = vector.load %arg3[%c0, %c0_0, %c0_1] : memref<1x16x128xf32, #tpu.memory_space<vmem>>, vector<1x16x128xf32>
    %1 = vector.shape_cast %0 : vector<1x16x128xf32> to vector<16x128xf32>
    %c0_2 = arith.constant 0 : index
    %c0_3 = arith.constant 0 : index
    %c0_4 = arith.constant 0 : index
    %2 = vector.load %arg4[%c0_2, %c0_3, %c0_4] : memref<1x128x32xf32, #tpu.memory_space<vmem>>, vector<1x128x32xf32>
    %3 = vector.shape_cast %2 : vector<1x128x32xf32> to vector<128x32xf32>
    %cst = arith.constant dense<0.000000e+00> : vector<16x32xf32>
    %4 = tpu.matmul %1, %3, %cst {dimension_numbers = #tpu.dot_dimension_numbers<[1], [0], [0], [1], [0, 0, 1, 1], [], []>} : vector<16x128xf32>, vector<128x32xf32>, vector<16x32xf32> -> vector<16x32xf32>
    %c0_5 = arith.constant 0 : index
    %c0_6 = arith.constant 0 : index
    %c0_7 = arith.constant 0 : index
    %5 = vector.load %arg5[%c0_5, %c0_6, %c0_7] : memref<1x1x32xf32, #tpu.memory_space<vmem>>, vector<1x1x32xf32>
    %6 = vector.shape_cast %5 : vector<1x1x32xf32> to vector<1x32xf32>
    %7 = vector.broadcast %6 : vector<1x32xf32> to vector<16x32xf32>
    %8 = arith.addf %4, %7 : vector<16x32xf32>
    %c0_8 = arith.constant 0 : index
    %c0_9 = arith.constant 0 : index
    %c0_10 = arith.constant 0 : index
    %c0_11 = arith.constant 0 : index
    %9 = vector.load %arg6[%c0_8, %c0_9, %c0_10, %c0_11] : memref<1x1x16x32xf32, #tpu.memory_space<vmem>>, vector<1x1x16x32xf32>
    %10 = vector.shape_cast %9 : vector<1x1x16x32xf32> to vector<16x32xf32>
    %11 = vector.shape_cast %8 : vector<16x32xf32> to vector<1x1x16x32xf32>
    tpu.vector_store %arg6[%c0_8, %c0_9, %c0_10, %c0_11], %11 {strides = array<i32>} : memref<1x1x16x32xf32, #tpu.memory_space<vmem>>, vector<1x1x16x32xf32>,
    return
  }
  func.func @transform_0(%arg0: i32, %arg1: i32, %arg2: i32) -> (i32, i32, i32) {
    %c0_i32 = arith.constant 0 : i32
    %c0_i32_0 = arith.constant 0 : i32
    return %arg0, %arg1, %c0_i32 : i32, i32, i32
  }
  func.func @transform_1(%arg0: i32, %arg1: i32, %arg2: i32) -> (i32, i32, i32) {
    %c0_i32 = arith.constant 0 : i32
    %c0_i32_0 = arith.constant 0 : i32
    %c0_i32_1 = arith.constant 0 : i32
    return %arg2, %c0_i32, %c0_i32_0 : i32, i32, i32
  }
  func.func @transform_2(%arg0: i32, %arg1: i32, %arg2: i32) -> (i32, i32, i32) {
    %c0_i32 = arith.constant 0 : i32
    %c0_i32_0 = arith.constant 0 : i32
    %c0_i32_1 = arith.constant 0 : i32
    return %arg2, %c0_i32, %c0_i32_0 : i32, i32, i32
  }
  func.func @transform_3(%arg0: i32, %arg1: i32, %arg2: i32) -> (i32, i32, i32, i32) {
    %c0_i32 = arith.constant 0 : i32
    %c0_i32_0 = arith.constant 0 : i32
    return %arg0, %arg2, %arg1, %c0_i32 : i32, i32, i32, i32
  }
}

</mosaic_0001>

<llo_original>
// kernel: tpu_custom_call.1
$region0: #{tpu_custom_call.1}
  #allocation0 [shape = 'u32[]', space=smem, size = 0x4, offset = 0x4, fixed_abs, tag = 'smem constant byte address 0x4 - core index']
  #allocation1 [shape = 'u32[144,128]{1,0:T(1,128)}', space=vmem, size = 0x12000, scoped, tag = 'internal scratch']
  %s0 = inlined_call_operand.vmem [shape: f32[2,16,128], index: 0, kind: input, shape index: {}]
  %s1 = inlined_call_operand.vmem [shape: f32[12,128,32], index: 1, kind: input, shape index: {}]
  %s2 = inlined_call_operand.vmem [shape: f32[12,1,32], index: 2, kind: input, shape index: {}]
  %s3 = inlined_call_operand.hbm [shape: f32[2,12,16,32], index: 3, kind: output, shape index: {}]
  %s4 = sld [smem:[#allocation0]]
  $region45: #{tpu_custom_call.1} parent=0
    _
  %s6 = ssub.s32 1, %s4
  %s7 = scalar_select 0, %s6, %s4
  $region1: #{tpu_custom_call.1} parent=0
    #allocation2 [shape = 'u8[16384]{0}', space=vmem, size = 0x4000, scoped, tag = 'output window, operand 0']
    #allocation3 [shape = 's32[2]{0}', space=sflag, size = 0x8, scoped, tag = 'scoped memory for tpu_custom_call.1']
    %8 = vsyncpa [#allocation3], 0
    %s9 = scalar_lea.sflag [#allocation3], 1
    %10 = vsyncpa %s9, 0
    loop: start=0, step=1, limit=26
    $region2: #{tpu_custom_call.1} parent=1 // loop_pre_header
      _
    $region3: #{tpu_custom_call.1} parent=1 // loop_header
      %s12 = sphi 0, %s16
      %p13 = scmp.ge.s32.totalorder %s12, 26
      %s19 = sphi 0, %s38
      %s20 = sphi 0, %s34
      %s21 = sphi 0, %s30
      %s22 = sphi 0, %s19
      %s23 = sphi 0, %s20
      %s24 = sphi 0, %s21
      %s25 = sphi 0, %s22
      %s26 = sphi 0, %s23
      %s27 = sphi 0, %s24
      %s43 = sphi 0, %s45
      %s46 = sphi 0, %s43
      %s47 = sphi 0, %s46
      %s63 = sphi 0, %s47
      %s69 = sphi 0, %s71
      %s72 = sphi 0, %s69
      %s73 = sphi 0, %s72
      %s89 = sphi 0, %s73
      %s95 = sphi 0, %s97
      %s98 = sphi 0, %s95
      %s99 = sphi 0, %s98
      %s115 = sphi 0, %s99
      %s125 = sphi 0, %s127
      %s128 = sphi 0, %s125
      %s129 = sphi 0, %s128
      %s145 = sphi 0, %s129
    $region4: #{tpu_custom_call.1} parent=1 // loop_header_branch
      %15 = sbr.rel (%p13) target = $region8
    $region5: #{tpu_custom_call.1} parent=1 // loop_body
      %s17 = ssub.s32 %s12, 1
      %s18 = ssub.s32 %s12, 2
      %s28 = sadd.s32 1, %s21
      %p29 = scmp.ge.s32.totalorder %s28, 12
      %s30 = scalar_select %p29, 0, %s28
      %s31 = sadd.s32 1, %s20
      %s32 = scalar_select %p29, %s31, %s20
      %p33 = scmp.ge.s32.totalorder %s32, 1
      %s34 = scalar_select %p33, 0, %s32
      %s35 = sadd.s32 1, %s19
      %s36 = scalar_select %p33, %s35, %s19
      %p37 = scmp.ge.s32.totalorder %s36, 2
      %s38 = scalar_select %p37, 0, %s36
      %s39 = ssub.s32 %s19, %s38
      %s40 = ssub.s32 %s20, %s34
      %s41 = sor.u32 %s39, %s40
      %p42 = scmp.eq.s32.totalorder %s41, 0
      %s44 = sadd.s32 %s43, 1
      %s45 = scalar_select %p42, %s43, %s44
      %p48 = pneg %p42
      %p49 = scmp.eq.s32.totalorder %s12, 23
      %p50 = por %p48, %p49
      %p51 = scmp.ne.s32.totalorder %s43, %s46
      %p52 = scmp.eq.s32.totalorder %s12, 0
      %p53 = por %p51, %p52
      %p54 = scmp.ne.s32.totalorder %s43, %s46
      %p55 = scmp.eq.s32.totalorder %s17, 23
      %p56 = por %p54, %p55
      %p57 = scmp.ne.s32.totalorder %s46, %s47
      %p58 = scmp.eq.s32.totalorder %s17, 0
      %p59 = por %p57, %p58
      %p60 = scmp.ne.s32.totalorder %s46, %s47
      %p61 = scmp.eq.s32.totalorder %s18, 23
      %p62 = por %p60, %p61
      %p64 = scmp.ne.s32.totalorder %s47, %s63
      %p65 = scmp.eq.s32.totalorder %s18, 0
      %p66 = por %p64, %p65
      %s67 = ssub.s32 %s21, %s30
      %p68 = scmp.eq.s32.totalorder %s67, 0
      %s70 = sadd.s32 %s69, 1
      %s71 = scalar_select %p68, %s69, %s70
      %p74 = pneg %p68
      %p75 = scmp.eq.s32.totalorder %s12, 23
      %p76 = por %p74, %p75
      %p77 = scmp.ne.s32.totalorder %s69, %s72
      %p78 = scmp.eq.s32.totalorder %s12, 0
      %p79 = por %p77, %p78
      %p80 = scmp.ne.s32.totalorder %s69, %s72
      %p81 = scmp.eq.s32.totalorder %s17, 23
      %p82 = por %p80, %p81
      %p83 = scmp.ne.s32.totalorder %s72, %s73
      %p84 = scmp.eq.s32.totalorder %s17, 0
      %p85 = por %p83, %p84
      %p86 = scmp.ne.s32.totalorder %s72, %s73
      %p87 = scmp.eq.s32.totalorder %s18, 23
      %p88 = por %p86, %p87
      %p90 = scmp.ne.s32.totalorder %s73, %s89
      %p91 = scmp.eq.s32.totalorder %s18, 0
      %p92 = por %p90, %p91
      %s93 = ssub.s32 %s21, %s30
      %p94 = scmp.eq.s32.totalorder %s93, 0
      %s96 = sadd.s32 %s95, 1
      %s97 = scalar_select %p94, %s95, %s96
      %p100 = pneg %p94
      %p101 = scmp.eq.s32.totalorder %s12, 23
      %p102 = por %p100, %p101
      %p103 = scmp.ne.s32.totalorder %s95, %s98
      %p104 = scmp.eq.s32.totalorder %s12, 0
      %p105 = por %p103, %p104
      %p106 = scmp.ne.s32.totalorder %s95, %s98
      %p107 = scmp.eq.s32.totalorder %s17, 23
      %p108 = por %p106, %p107
      %p109 = scmp.ne.s32.totalorder %s98, %s99
      %p110 = scmp.eq.s32.totalorder %s17, 0
      %p111 = por %p109, %p110
      %p112 = scmp.ne.s32.totalorder %s98, %s99
      %p113 = scmp.eq.s32.totalorder %s18, 23
      %p114 = por %p112, %p113
      %p116 = scmp.ne.s32.totalorder %s99, %s115
      %p117 = scmp.eq.s32.totalorder %s18, 0
      %p118 = por %p116, %p117
      %s119 = ssub.s32 %s19, %s38
      %s120 = ssub.s32 %s21, %s30
      %s121 = sor.u32 %s119, %s120
      %s122 = ssub.s32 %s20, %s34
      %s123 = sor.u32 %s121, %s122
      %p124 = scmp.eq.s32.totalorder %s123, 0
      %s126 = sadd.s32 %s125, 1
      %s127 = scalar_select %p124, %s125, %s126
      %p130 = pneg %p124
      %p131 = scmp.eq.s32.totalorder %s12, 23
      %p132 = por %p130, %p131
      %p133 = scmp.ne.s32.totalorder %s125, %s128
      %p134 = scmp.eq.s32.totalorder %s12, 0
      %p135 = por %p133, %p134
      %p136 = scmp.ne.s32.totalorder %s125, %s128
      %p137 = scmp.eq.s32.totalorder %s17, 23
      %p138 = por %p136, %p137
      %p139 = scmp.ne.s32.totalorder %s128, %s129
      %p140 = scmp.eq.s32.totalorder %s17, 0
      %p141 = por %p139, %p140
      %p142 = scmp.ne.s32.totalorder %s128, %s129
      %p143 = scmp.eq.s32.totalorder %s18, 23
      %p144 = por %p142, %p143
      %p146 = scmp.ne.s32.totalorder %s129, %s145
      %p147 = scmp.eq.s32.totalorder %s18, 0
      %p148 = por %p146, %p147
      %p149 = scmp.le.s32.totalorder 1, %s12
      %p150 = scmp.lt.s32.totalorder %s12, 25
      %p151 = pnand %p149, %p150
      %p152 = pneg %p151
      // Predicated region
      $region9: #{tpu_custom_call.1} parent=5 // pred_check
        _
      $region10: #{tpu_custom_call.1} parent=5 // pred_check_branch
        %154 = sbr.rel (%p151) target = $region12
      $region11: #{tpu_custom_call.1} parent=5 // pred_region
        %s155 = ssub.s32 %s12, 1
      $region12: #{tpu_custom_call.1} parent=5 // pred_fallthru
        _
      %p156 = scmp.lt.s32.totalorder %s12, 24
      // Predicated region
      $region13: #{tpu_custom_call.1} parent=5 // pred_check
        %p157 = pneg %p156
      $region14: #{tpu_custom_call.1} parent=5 // pred_check_branch
        %159 = sbr.rel (%p157) target = $region16
      $region15: #{tpu_custom_call.1} parent=5 // pred_region
        // Predicated region
        $region17: #{tpu_custom_call.1} parent=15 // pred_check
          %p160 = pneg %p53
        $region18: #{tpu_custom_call.1} parent=15 // pred_check_branch
          %162 = sbr.rel (%p160) target = $region20
        $region19: #{tpu_custom_call.1} parent=15 // pred_region
          %s163 = smul.u32 2, %s20
          %p164 = scmp.lt.s32.totalorder %s19, 1
          %s165 = scalar_select %p164, %s19, 1
          %p166 = scmp.lt.s32.totalorder %s163, 1
          %s167 = scalar_select %p166, %s163, 1
          %s168 = smul.addr %s165, 2
          %s169 = sadd.s32 %s167, %s168
          %s170 = smul.addr %s169, 8
          %s171 = scalar_lea.vmem %s0, %s170
          %s172 = smul.u32 2, %s20
        $region20: #{tpu_custom_call.1} parent=15 // pred_fallthru
          _
        // Predicated region
        $region21: #{tpu_custom_call.1} parent=15 // pred_check
          %p173 = pneg %p79
        $region22: #{tpu_custom_call.1} parent=15 // pred_check_branch
          %175 = sbr.rel (%p173) target = $region24
        $region23: #{tpu_custom_call.1} parent=15 // pred_region
          %p176 = scmp.lt.s32.totalorder %s21, 11
          %s177 = scalar_select %p176, %s21, 11
          %s178 = smul.addr %s177, 16
          %s179 = smul.addr %s178, 8
          %s180 = scalar_lea.vmem %s1, %s179
        $region24: #{tpu_custom_call.1} parent=15 // pred_fallthru
          _
        // Predicated region
        $region25: #{tpu_custom_call.1} parent=15 // pred_check
          %p181 = pneg %p105
        $region26: #{tpu_custom_call.1} parent=15 // pred_check_branch
          %183 = sbr.rel (%p181) target = $region28
        $region27: #{tpu_custom_call.1} parent=15 // pred_region
          %p184 = scmp.lt.s32.totalorder %s21, 11
          %s185 = scalar_select %p184, %s21, 11
          %s186 = scalar_lea.vmem %s2, %s185
        $region28: #{tpu_custom_call.1} parent=15 // pred_fallthru
          _
      $region16: #{tpu_custom_call.1} parent=5 // pred_fallthru
        _
      %p187 = scmp.le.s32.totalorder 1, %s12
      %p188 = scmp.lt.s32.totalorder %s12, 25
      %p189 = pnand %p187, %p188
      %p190 = pneg %p189
      // Predicated region
      $region29: #{tpu_custom_call.1} parent=5 // pred_check
        _
      $region30: #{tpu_custom_call.1} parent=5 // pred_check_branch
        %192 = sbr.rel (%p189) target = $region32
      $region31: #{tpu_custom_call.1} parent=5 // pred_region
        %s193 = ssub.s32 %s12, 1
        %s194 = smul.u32 2, %s23
        %p195 = scmp.lt.s32.totalorder %s22, 1
        %s196 = scalar_select %p195, %s22, 1
        %p197 = scmp.lt.s32.totalorder %s194, 1
        %s198 = scalar_select %p197, %s194, 1
        %s199 = smul.addr %s196, 2
        %s200 = sadd.s32 %s198, %s199
        %s201 = smul.addr %s200, 8
        %s202 = scalar_lea.vmem %s0, %s201
        %p203 = pneg %p59
        %p204 = pneg %p56
        %p205 = scmp.lt.s32.totalorder %s24, 11
        %s206 = scalar_select %p205, %s24, 11
        %s207 = smul.addr %s206, 16
        %s208 = smul.addr %s207, 8
        %s209 = scalar_lea.vmem %s1, %s208
        %p210 = pneg %p85
        %p211 = pneg %p82
        %p212 = scmp.lt.s32.totalorder %s24, 11
        %s213 = scalar_select %p212, %s24, 11
        %s214 = scalar_lea.vmem %s2, %s213
        %p215 = pneg %p111
        %p216 = pneg %p108
        %p217 = pneg %p141
        %p218 = pneg %p138
        %s219 = sand.u32 %s128, 1
        %s220 = scalar_lea.sflag [#allocation3], %s219
        %s221 = sand.u32 %s128, 1
        %s222 = smul.addr %s221, 16
        %s223 = scalar_lea.vmem [#allocation2], %s222
        %s224 = smul.u32 2, %s23
        %p225 = scmp.lt.s32.totalorder %s22, 1
        %s226 = scalar_select %p225, %s22, 1
        %p227 = scmp.lt.s32.totalorder %s224, 1
        %s228 = scalar_select %p227, %s224, 1
        %s229 = smul.addr %s226, 2
        %s230 = sadd.s32 %s228, %s229
        %s231 = smul.addr %s230, 8
        %s232 = scalar_lea.vmem %s0, %s231
        %s233 = smul.u32 2, %s23
        %p234 = scmp.lt.s32.totalorder %s24, 11
        %s235 = scalar_select %p234, %s24, 11
        %s236 = smul.addr %s235, 16
        %s237 = smul.addr %s236, 8
        %s238 = scalar_lea.vmem %s1, %s237
        %p239 = scmp.lt.s32.totalorder %s24, 11
        %s240 = scalar_select %p239, %s24, 11
        %s241 = scalar_lea.vmem %s2, %s240
        %s242 = smul.u32 2, %s23
        %v243 = vld [vmem:[%s232] sm:$0xff]
        %v244 = vld [vmem:[%s232 + $0x8] sm:$0xff]
        %v245 = vld [vmem:[%s238] sm:$0xff]
        %v246 = vld [vmem:[%s238 + $0x8] sm:$0xff]
        %v247 = vld [vmem:[%s238 + $0x10] sm:$0xff]
        %v248 = vld [vmem:[%s238 + $0x18] sm:$0xff]
        %v249 = vld [vmem:[%s238 + $0x20] sm:$0xff]
        %v250 = vld [vmem:[%s238 + $0x28] sm:$0xff]
        %v251 = vld [vmem:[%s238 + $0x30] sm:$0xff]
        %v252 = vld [vmem:[%s238 + $0x38] sm:$0xff]
        %v253 = vld [vmem:[%s238 + $0x40] sm:$0xff]
        %v254 = vld [vmem:[%s238 + $0x48] sm:$0xff]
        %v255 = vld [vmem:[%s238 + $0x50] sm:$0xff]
        %v256 = vld [vmem:[%s238 + $0x58] sm:$0xff]
        %v257 = vld [vmem:[%s238 + $0x60] sm:$0xff]
        %v258 = vld [vmem:[%s238 + $0x68] sm:$0xff]
        %v259 = vld [vmem:[%s238 + $0x70] sm:$0xff]
        %v260 = vld [vmem:[%s238 + $0x78] sm:$0xff]
        %v261 = vld [vmem:[%s241] sm:$0x1]
        %v263 = vlaneseq
        %v264 = vshrl.u32 %v263, 7
        %v265 = vsub.s32 0, %v264
        %v266 = vrot.slane %v261, %v265
        %268 = vmatprep.subr.mxu0 0.0
        %269 = vmatpush1.msra.mxu0 %v260
        %270 = vmatprep.subr.mxu0 0.0
        %271 = vmatpush1.msra.mxu0 %v259
        %272 = vmatprep.subr.mxu0 0.0
        %273 = vmatpush1.msra.mxu0 %v258
        %274 = vmatprep.subr.mxu0 0.0
        %275 = vmatpush1.msra.mxu0 %v257
        %276 = vmatprep.subr.mxu0 0.0
        %277 = vmatpush1.msra.mxu0 %v256
        %278 = vmatprep.subr.mxu0 0.0
        %279 = vmatpush1.msra.mxu0 %v255
        %280 = vmatprep.subr.mxu0 0.0
        %281 = vmatpush1.msra.mxu0 %v254
        %282 = vmatprep.subr.mxu0 0.0
        %283 = vmatpush1.msra.mxu0 %v253
        %284 = vmatprep.subr.mxu0 0.0
        %285 = vmatpush1.msra.mxu0 %v252
        %286 = vmatprep.subr.mxu0 0.0
        %287 = vmatpush1.msra.mxu0 %v251
        %288 = vmatprep.subr.mxu0 0.0
        %289 = vmatpush1.msra.mxu0 %v250
        %290 = vmatprep.subr.mxu0 0.0
        %291 = vmatpush1.msra.mxu0 %v249
        %292 = vmatprep.subr.mxu0 0.0
        %293 = vmatpush1.msra.mxu0 %v248
        %294 = vmatprep.subr.mxu0 0.0
        %295 = vmatpush1.msra.mxu0 %v247
        %296 = vmatprep.subr.mxu0 0.0
        %297 = vmatpush1.msra.mxu0 %v246
        %298 = vmatprep.subr.mxu0 0.0
        %299 = vmatpush1.msra.mxu0 %v245
        %300 = vmatprep.subr.mxu0 0.0
        %301 = vmatpush2.msra.mxu0 0.0
        %302 = vmatprep.subr.mxu0 0.0
        %303 = vmatpush2.msra.mxu0 0.0
        %304 = vmatprep.subr.mxu0 0.0
        %305 = vmatpush2.msra.mxu0 0.0
        %306 = vmatprep.subr.mxu0 0.0
        %307 = vmatpush2.msra.mxu0 0.0
        %308 = vmatprep.subr.mxu0 0.0
        %309 = vmatpush2.msra.mxu0 0.0
        %310 = vmatprep.subr.mxu0 0.0
        %311 = vmatpush2.msra.mxu0 0.0
        %312 = vmatprep.subr.mxu0 0.0
        %313 = vmatpush2.msra.mxu0 0.0
        %314 = vmatprep.subr.mxu0 0.0
        %315 = vmatpush2.msra.mxu0 0.0
        %316 = vmatprep.subr.mxu0 0.0
        %317 = vmatpush2.msra.mxu0 0.0
        %318 = vmatprep.subr.mxu0 0.0
        %319 = vmatpush2.msra.mxu0 0.0
        %320 = vmatprep.subr.mxu0 0.0
        %321 = vmatpush2.msra.mxu0 0.0
        %322 = vmatprep.subr.mxu0 0.0
        %323 = vmatpush2.msra.mxu0 0.0
        %324 = vmatprep.subr.mxu0 0.0
        %325 = vmatpush2.msra.mxu0 0.0
        %326 = vmatprep.subr.mxu0 0.0
        %327 = vmatpush2.msra.mxu0 0.0
        %328 = vmatprep.subr.mxu0 0.0
        %329 = vmatpush2.msra.mxu0 0.0
        %330 = vmatprep.subr.mxu0 0.0
        %331 = vmatpush2.msra.mxu0 0.0
        %332 = vmatprep.mubr.f32.mxu0 0.0
        %333 = vmatmul.mubr.f32.gmra.mxu0 %v243
        %v334 = vpop.f32.mrf.mxu0
        %v335 = vadd.f32 %v266, %v334
        %v336 = vpop.f32.mrf.mxu0
        %337 = vmatprep.mubr.f32.mxu0 0.0
        %338 = vmatmul.mubr.f32.gmra.mxu0 %v244
        %v339 = vpop.f32.mrf.mxu0
        %v340 = vadd.f32 %v266, %v339
        %v341 = vpop.f32.mrf.mxu0
        %342 = vdwg.mxu0
        %vm343 = vcmask 261120
        %344 = vst.msk [vmem:[%s223] sm:$0xff] %vm343, %v335
        %345 = vst.msk [vmem:[%s223 + $0x8] sm:$0xff] %vm343, %v340
        %s346 = sand.u32 %s128, 1
        %s347 = scalar_lea.sflag [#allocation3], %s346
        %s348 = sand.u32 %s128, 1
        %s349 = smul.addr %s348, 16
        %s350 = scalar_lea.vmem [#allocation2], %s349
        // Predicated region
        $region33: #{tpu_custom_call.1} parent=31 // pred_check
          %p351 = pneg %p138
        $region34: #{tpu_custom_call.1} parent=31 // pred_check_branch
          %353 = sbr.rel (%p351) target = $region36
        $region35: #{tpu_custom_call.1} parent=31 // pred_region
          %s354 = smul.u32 2, %s23
          %s356 = ssub.s32 256, 256
          %357 = vsyncadd %s347, %s356
          %s358 = smul.addr %s24, 2
          %s359 = sadd.s32 %s354, %s358
          %s360 = smul.addr %s22, 24
          %s361 = sadd.s32 %s359, %s360
          %s362 = smul.addr %s361, 128
          %s363 = scalar_lea.hbm %s3, %s362
          %s364 = sshll.u32 %s350, 4
          %s365 = int_to_ptr.vmem [resolvable:$true] %s364
          %370 = dma.vmem_to_hbm [thread:$0]  %s365, 256, %s363, %s347, 128, 128, 8
        $region36: #{tpu_custom_call.1} parent=31 // pred_fallthru
          _
      $region32: #{tpu_custom_call.1} parent=5 // pred_fallthru
        _
      %p371 = scmp.le.s32.totalorder 2, %s12
      // Predicated region
      $region37: #{tpu_custom_call.1} parent=5 // pred_check
        %p372 = pneg %p371
      $region38: #{tpu_custom_call.1} parent=5 // pred_check_branch
        %374 = sbr.rel (%p372) target = $region40
      $region39: #{tpu_custom_call.1} parent=5 // pred_region
        %s375 = ssub.s32 %s12, 2
        // Predicated region
        $region41: #{tpu_custom_call.1} parent=39 // pred_check
          %p376 = pneg %p144
        $region42: #{tpu_custom_call.1} parent=39 // pred_check_branch
          %378 = sbr.rel (%p376) target = $region44
        $region43: #{tpu_custom_call.1} parent=39 // pred_region
          %s379 = sand.u32 %s129, 1
          %s380 = scalar_lea.sflag [#allocation3], %s379
          %s381 = sand.u32 %s129, 1
          %s382 = smul.addr %s381, 16
          %s383 = scalar_lea.vmem [#allocation2], %s382
          %384 = dma.done %s380, 256
        $region44: #{tpu_custom_call.1} parent=39 // pred_fallthru
          _
      $region40: #{tpu_custom_call.1} parent=5 // pred_fallthru
        _
    $region6: #{tpu_custom_call.1} parent=1 // loop_footer
      %s16 = sadd.s32 1, %s12
    $region7: #{tpu_custom_call.1} parent=1 // loop_footer_branch
      %11 = sbr.rel target = $region3
    $region8: #{tpu_custom_call.1} parent=1 // loop_exit
      _
    %385 = vsyncpa [#allocation3], 1
    %s386 = scalar_lea.sflag [#allocation3], 1
    %387 = vsyncpa %s386, 1

</llo_original>
